<compile_context>
chip_gen: v5e
topology: v5e:2x2
jax: 0.10.0
libtpu: 0.0.40
codegen_flags: <defaults>
</compile_context>

<pallas_src>
import jax
import jax.numpy as jnp
from jax.experimental import pallas as pl
from jax.experimental.pallas import tpu as pltpu


def _round_up(x, m):
    return ((x + m - 1) // m) * m


def _label_embedder_kernel(labels_ref, table_ref, o_ref, acc_ref):
    # labels: (TN, 1) int32 (drop already folded in);  table: (VK, H) tile of
    # the padded vocabulary;  o/acc: (TN, H).
    k = pl.program_id(1)

    @pl.when(k == 0)
    def _():
        acc_ref[...] = jnp.zeros_like(acc_ref)

    vk = table_ref.shape[0]
    class_ids = jax.lax.broadcasted_iota(jnp.int32, (1, vk), 1) + k * vk
    one_hot = (labels_ref[...] == class_ids).astype(table_ref.dtype)   # (TN, VK)

    # Embedding gather as an MXU matmul with f32 accumulation (exact: each row
    # selects exactly one table row).
    acc_ref[...] += jnp.dot(one_hot, table_ref[...],
                            preferred_element_type=jnp.float32)

    @pl.when(k == pl.num_programs(1) - 1)
    def _():
        o_ref[...] = acc_ref[...].astype(o_ref.dtype)


def label_embedder(labels, embedding_table, *, num_classes, dropout_prob,
                   train=False, force_drop_ids=None, rng=None,
                   block_n=256, v_chunk=256, use_pallas=None):
    """Forward pass of LabelEmbedder.

    labels:           (N,) integer class ids in [0, num_classes).
    embedding_table:  (num_classes + use_cfg, H) embedding weights.
    force_drop_ids:   optional (N,) array; entries == 1 force the CFG drop.
    rng:              PRNG key, required when train=True, dropout_prob>0 and
                      force_drop_ids is None (mirrors torch.rand(...) < p).
    use_pallas:       None = auto (tiny problems use a plain XLA gather).
    """
    n = labels.shape[0]
    v, h = embedding_table.shape

    # ---- CFG token drop, folded into the labels in the wrapper -----------
    use_dropout = dropout_prob > 0
    dropping = (train and use_dropout) or (force_drop_ids is not None)
    if dropping:
        if v < num_classes + 1:
            raise ValueError(
                "embedding_table must contain a null (CFG) row at index "
                f"num_classes={num_classes}, got only {v} rows")
        if force_drop_ids is not None:
            drop = force_drop_ids == 1
        else:
            if rng is None:
                raise ValueError("rng key required for random label dropout")
            drop = jax.random.uniform(rng, (n,)) < dropout_prob
        lbl = jnp.where(drop, jnp.int32(num_classes), labels.astype(jnp.int32))
    else:
        lbl = labels.astype(jnp.int32)

    # ---- tiny-problem fast path: pallas_call fixed cost would dominate ----
    if use_pallas is None:
        use_pallas = (n * v) >= 4096
    if not use_pallas:
        return jnp.take(embedding_table, lbl, axis=0)

    # ---- padding: V to the MXU contraction granule, H to the lane width ---
    # Padded table rows are zero; padded one-hot columns can never match, so
    # results are unchanged.
    v_pad = _round_up(v, v_chunk)
    h_pad = _round_up(h, 128)
    table_p = embedding_table
    if (v_pad, h_pad) != (v, h):
        table_p = jnp.pad(embedding_table, ((0, v_pad - v), (0, h_pad - h)))

    # ---- batch tiling ------------------------------------------------------
    block_n = max(8, _round_up(block_n, 8))
    n8 = _round_up(n, 8)
    if n8 <= block_n:
        # Keep >=2 batch grid steps when the batch allows it so the "parallel"
        # axis can be sharded across both v7x TensorCores (neutral v5e/v6e).
        tn = n8 if n8 <= 8 else _round_up((n8 + 1) // 2, 8)
    else:
        tn = block_n
    n_pad = _round_up(n, tn)

    # Padded batch rows get label 0 -> they produce real class-0 embeddings in
    # the padded output region, which is sliced off below (never aliased).
    labels2d = jnp.pad(lbl, (0, n_pad - n)).reshape(n_pad, 1)

    grid_i = n_pad // tn
    grid_k = v_pad // v_chunk

    itemsize = jnp.dtype(table_p.dtype).itemsize
    cost = pl.CostEstimate(
        flops=2 * n_pad * v_pad * h_pad,
        transcendentals=0,
        bytes_accessed=(grid_i * v_pad * h_pad * itemsize   # table streamed per batch tile
                        + n_pad * 4                         # labels
                        + n_pad * h_pad * itemsize),        # output
    )

    out = pl.pallas_call(
        _label_embedder_kernel,
        out_shape=jax.ShapeDtypeStruct((n_pad, h_pad), embedding_table.dtype),
        grid=(grid_i, grid_k),
        in_specs=[
            pl.BlockSpec((tn, 1), lambda i, k: (i, 0)),          # labels tile
            pl.BlockSpec((v_chunk, h_pad), lambda i, k: (k, 0)),  # table V-tile
        ],
        out_specs=pl.BlockSpec((tn, h_pad), lambda i, k: (i, 0)),
        scratch_shapes=[pltpu.VMEM((tn, h_pad), jnp.float32)],
        compiler_params=pltpu.CompilerParams(
            dimension_semantics=("parallel", "arbitrary")),
        cost_estimate=cost,
    )(labels2d, table_p)

    return out[:n, :h]


def reference(labels, embedding_table, *, num_classes, drop):
    """Pure-JAX reference mirroring the PyTorch forward."""
    lbl = jnp.where(drop, num_classes, labels)
    return embedding_table[lbl]


if __name__ == "__main__":
    key = jax.random.PRNGKey(0)
    k_tab, k_lbl, k_drop, k_tab2, k_lbl2 = jax.random.split(key, 5)

    # ---- test 1: small DiT-style config, drop + eval paths ----------------
    NUM_CLASSES = 16
    HIDDEN = 128
    N = 32
    DROPOUT = 0.1        # > 0 -> table has an extra CFG ("null") row

    table = jax.random.normal(k_tab, (NUM_CLASSES + 1, HIDDEN), jnp.float32) * 0.02
    labels = jax.random.randint(k_lbl, (N,), 0, NUM_CLASSES, dtype=jnp.int32)
    force_drop_ids = (jax.random.uniform(k_drop, (N,)) < 0.5).astype(jnp.int32)

    # training / CFG with explicit force_drop_ids (deterministic)
    out_drop = label_embedder(labels, table, num_classes=NUM_CLASSES,
                              dropout_prob=DROPOUT, train=True,
                              force_drop_ids=force_drop_ids, use_pallas=True)
    out_drop = jax.block_until_ready(out_drop)
    ref_drop = reference(labels, table, num_classes=NUM_CLASSES,
                         drop=force_drop_ids == 1)

    # eval (no dropout) -> plain embedding lookup
    out_eval = label_embedder(labels, table, num_classes=NUM_CLASSES,
                              dropout_prob=DROPOUT, train=False,
                              use_pallas=True)
    out_eval = jax.block_until_ready(out_eval)
    ref_eval = reference(labels, table, num_classes=NUM_CLASSES,
                         drop=jnp.zeros((N,), bool))

    assert out_drop.shape == (N, HIDDEN)
    assert out_eval.shape == (N, HIDDEN)
    assert jnp.allclose(out_drop, ref_drop, atol=1e-6, rtol=1e-6), \
        f"max abs err (drop path) {jnp.max(jnp.abs(out_drop - ref_drop))}"
    assert jnp.allclose(out_eval, ref_eval, atol=1e-6, rtol=1e-6), \
        f"max abs err (eval path) {jnp.max(jnp.abs(out_eval - ref_eval))}"

    # ---- test 2: vocab spanning multiple contraction chunks ---------------
    NUM_CLASSES2 = 300   # v_pad = 512 -> 2 K-axis grid steps, exercises the acc
    table2 = jax.random.normal(k_tab2, (NUM_CLASSES2 + 1, HIDDEN), jnp.float32) * 0.02
    labels2 = jax.random.randint(k_lbl2, (N,), 0, NUM_CLASSES2, dtype=jnp.int32)
    out2 = label_embedder(labels2, table2, num_classes=NUM_CLASSES2,
                          dropout_prob=DROPOUT, train=False, use_pallas=True)
    out2 = jax.block_until_ready(out2)
    ref2 = reference(labels2, table2, num_classes=NUM_CLASSES2,
                     drop=jnp.zeros((N,), bool))
    assert jnp.allclose(out2, ref2, atol=1e-6, rtol=1e-6), \
        f"max abs err (multi-chunk path) {jnp.max(jnp.abs(out2 - ref2))}"

    # ---- test 3: auto dispatch (tiny problem -> XLA gather fast path) -----
    out_auto = label_embedder(labels, table, num_classes=NUM_CLASSES,
                              dropout_prob=DROPOUT, train=False)
    out_auto = jax.block_until_ready(out_auto)
    assert jnp.allclose(out_auto, ref_eval, atol=1e-6, rtol=1e-6)

    print("KERNEL_OK")
</pallas_src>

<mosaic_0001>
module attributes {stable_mosaic.version = 11 : i64} {
  func.func @_label_embedder_kernel(%arg0: i32, %arg1: i32, %arg2: memref<16x1xi32, #tpu.memory_space<vmem>>, %arg3: memref<256x128xf32, #tpu.memory_space<vmem>>, %arg4: memref<16x128xf32, #tpu.memory_space<vmem>>, %arg5: memref<16x128xf32, #tpu.memory_space<vmem>>) attributes {dimension_semantics = [#tpu.dimension_semantics<parallel>, #tpu.dimension_semantics<arbitrary>], iteration_bounds = array<i64: 2, 1>, scalar_prefetch = 0 : i64, scratch_operands = 1 : i64, tpu.core_type = #tpu.core_type<tc>, window_params = [{transform_indices = @transform_0, window_bounds = array<i64: 16, 1>}, {transform_indices = @transform_1, window_bounds = array<i64: 256, 128>}, {transform_indices = @transform_2, window_bounds = array<i64: 16, 128>}]} {
    %c0_i32 = arith.constant 0 : i32
    %0 = arith.cmpi eq, %arg1, %c0_i32 : i32
    %1 = arith.extui %0 : i1 to i32
    %c0_i32_0 = arith.constant 0 : i32
    %2 = arith.cmpi ne, %1, %c0_i32_0 : i32
    scf.if %2 {
      %cst_10 = arith.constant 0.000000e+00 : f32
      %21 = vector.broadcast %cst_10 : f32 to vector<16x128xf32>
      %c0_11 = arith.constant 0 : index
      %c0_12 = arith.constant 0 : index
      %22 = vector.load %arg5[%c0_11, %c0_12] : memref<16x128xf32, #tpu.memory_space<vmem>>, vector<16x128xf32>
      tpu.vector_store %arg5[%c0_11, %c0_12], %21 {strides = array<i32>} : memref<16x128xf32, #tpu.memory_space<vmem>>, vector<16x128xf32>,
    } else {
    }
    %3 = tpu.iota {dimensions = array<i32: 1>} : vector<1x256xi32>
    %c256_i32 = arith.constant 256 : i32
    %4 = arith.muli %arg1, %c256_i32 : i32
    %5 = vector.broadcast %4 : i32 to vector<1x256xi32>
    %6 = arith.addi %3, %5 : vector<1x256xi32>
    %c0 = arith.constant 0 : index
    %c0_1 = arith.constant 0 : index
    %7 = vector.load %arg2[%c0, %c0_1] : memref<16x1xi32, #tpu.memory_space<vmem>>, vector<16x1xi32>
    %8 = vector.broadcast %7 : vector<16x1xi32> to vector<16x256xi32>
    %9 = vector.broadcast %6 : vector<1x256xi32> to vector<16x256xi32>
    %10 = arith.cmpi eq, %8, %9 : vector<16x256xi32>
    %11 = arith.extui %10 : vector<16x256xi1> to vector<16x256xi32>
    %12 = arith.sitofp %11 : vector<16x256xi32> to vector<16x256xf32>
    %c0_2 = arith.constant 0 : index
    %c0_3 = arith.constant 0 : index
    %13 = vector.load %arg5[%c0_2, %c0_3] : memref<16x128xf32, #tpu.memory_space<vmem>>, vector<16x128xf32>
    %c0_4 = arith.constant 0 : index
    %c0_5 = arith.constant 0 : index
    %14 = vector.load %arg3[%c0_4, %c0_5] : memref<256x128xf32, #tpu.memory_space<vmem>>, vector<256x128xf32>
    %cst = arith.constant dense<0.000000e+00> : vector<16x128xf32>
    %15 = tpu.matmul %12, %14, %cst {dimension_numbers = #tpu.dot_dimension_numbers<[1], [0], [0], [1], [0, 0, 1, 1], [], []>} : vector<16x256xf32>, vector<256x128xf32>, vector<16x128xf32> -> vector<16x128xf32>
    %16 = arith.addf %13, %15 : vector<16x128xf32>
    %c0_6 = arith.constant 0 : index
    %c0_7 = arith.constant 0 : index
    %17 = vector.load %arg5[%c0_6, %c0_7] : memref<16x128xf32, #tpu.memory_space<vmem>>, vector<16x128xf32>
    tpu.vector_store %arg5[%c0_6, %c0_7], %16 {strides = array<i32>} : memref<16x128xf32, #tpu.memory_space<vmem>>, vector<16x128xf32>,
    %c0_i32_8 = arith.constant 0 : i32
    %18 = arith.cmpi eq, %arg1, %c0_i32_8 : i32
    %19 = arith.extui %18 : i1 to i32
    %c0_i32_9 = arith.constant 0 : i32
    %20 = arith.cmpi ne, %19, %c0_i32_9 : i32
    scf.if %20 {
      %c0_10 = arith.constant 0 : index
      %c0_11 = arith.constant 0 : index
      %21 = vector.load %arg5[%c0_10, %c0_11] : memref<16x128xf32, #tpu.memory_space<vmem>>, vector<16x128xf32>
      %c0_12 = arith.constant 0 : index
      %c0_13 = arith.constant 0 : index
      %22 = vector.load %arg4[%c0_12, %c0_13] : memref<16x128xf32, #tpu.memory_space<vmem>>, vector<16x128xf32>
      tpu.vector_store %arg4[%c0_12, %c0_13], %21 {strides = array<i32>} : memref<16x128xf32, #tpu.memory_space<vmem>>, vector<16x128xf32>,
    } else {
    }
    return
  }
  func.func @transform_0(%arg0: i32, %arg1: i32) -> (i32, i32) {
    %c0_i32 = arith.constant 0 : i32
    %c0_i32_0 = arith.constant 0 : i32
    return %arg0, %c0_i32 : i32, i32
  }
  func.func @transform_1(%arg0: i32, %arg1: i32) -> (i32, i32) {
    %c0_i32 = arith.constant 0 : i32
    %c0_i32_0 = arith.constant 0 : i32
    return %arg1, %c0_i32 : i32, i32
  }
  func.func @transform_2(%arg0: i32, %arg1: i32) -> (i32, i32) {
    %c0_i32 = arith.constant 0 : i32
    %c0_i32_0 = arith.constant 0 : i32
    return %arg0, %c0_i32 : i32, i32
  }
}

</mosaic_0001>

<llo_original>
// kernel: tpu_custom_call.1
$region0: #{tpu_custom_call.1}
  #allocation0 [shape = 'u32[]', space=smem, size = 0x4, offset = 0x4, fixed_abs, tag = 'smem constant byte address 0x4 - core index']
  #allocation1 [shape = 'u32[72,128]{1,0:T(1,128)}', space=vmem, size = 0x9000, scoped, tag = 'internal scratch']
  #allocation2 [shape = 'f32[16,128]{1,0:T(8,128)}', space=vmem, size = 0x2000, scoped, tag = 'scratch operand']
  %s0 = inlined_call_operand.vmem [shape: s32[32,1], index: 0, kind: input, shape index: {}]
  %s1 = inlined_call_operand.hbm [shape: f32[256,128], index: 1, kind: input, shape index: {}]
  %s2 = inlined_call_operand.hbm [shape: f32[32,128], index: 2, kind: output, shape index: {}]
  %s3 = sld [smem:[#allocation0]]
  $region53: #{tpu_custom_call.1} parent=0
    _
  %s5 = ssub.s32 1, %s3
  %s6 = scalar_select 0, %s5, %s3
  $region1: #{tpu_custom_call.1} parent=0
    #allocation3 [shape = 'u8[131072]{0}', space=vmem, size = 0x20000, scoped, tag = 'input window, operand 1, single buffered']
    #allocation4 [shape = 's32[2]{0}', space=sflag, size = 0x8, scoped, tag = 'scoped memory for tpu_custom_call.1']
    #allocation5 [shape = 's32[2]{0}', space=sflag, size = 0x8, scoped, tag = 'scoped memory for tpu_custom_call.1']
    #allocation6 [shape = 'u8[16384]{0}', space=vmem, size = 0x4000, scoped, tag = 'output window, operand 0']
    %7 = vsyncpa [#allocation4], 0
    %8 = vsyncpa [#allocation5], 0
    %s9 = scalar_lea.sflag [#allocation5], 1
    %10 = vsyncpa %s9, 0
    loop: start=0, step=1, limit=4
    $region2: #{tpu_custom_call.1} parent=1 // loop_pre_header
      _
    $region3: #{tpu_custom_call.1} parent=1 // loop_header
      %s12 = sphi 0, %s16
      %p13 = scmp.ge.s32.totalorder %s12, 4
      %s19 = sphi 0, %s31
      %s20 = sphi 0, %s27
      %s21 = sphi 0, %s19
      %s22 = sphi 0, %s20
      %s23 = sphi 0, %s21
      %s24 = sphi 0, %s22
      %s34 = sphi 0, %s36
      %s37 = sphi 0, %s34
      %s38 = sphi 0, %s37
      %s54 = sphi 0, %s38
      %s60 = sphi 0, %s62
      %s63 = sphi 0, %s60
      %s64 = sphi 0, %s63
      %s80 = sphi 0, %s64
      %s86 = sphi 0, %s88
      %s89 = sphi 0, %s86
      %s90 = sphi 0, %s89
      %s106 = sphi 0, %s90
    $region4: #{tpu_custom_call.1} parent=1 // loop_header_branch
      %15 = sbr.rel (%p13) target = $region8
    $region5: #{tpu_custom_call.1} parent=1 // loop_body
      %s17 = ssub.s32 %s12, 1
      %s18 = ssub.s32 %s12, 2
      %s25 = sadd.s32 1, %s20
      %p26 = scmp.ge.s32.totalorder %s25, 1
      %s27 = scalar_select %p26, 0, %s25
      %s28 = sadd.s32 1, %s19
      %s29 = scalar_select %p26, %s28, %s19
      %p30 = scmp.ge.s32.totalorder %s29, 2
      %s31 = scalar_select %p30, 0, %s29
      %s32 = ssub.s32 %s19, %s31
      %p33 = scmp.eq.s32.totalorder %s32, 0
      %s35 = sadd.s32 %s34, 1
      %s36 = scalar_select %p33, %s34, %s35
      %p39 = pneg %p33
      %p40 = scmp.eq.s32.totalorder %s12, 1
      %p41 = por %p39, %p40
      %p42 = scmp.ne.s32.totalorder %s34, %s37
      %p43 = scmp.eq.s32.totalorder %s12, 0
      %p44 = por %p42, %p43
      %p45 = scmp.ne.s32.totalorder %s34, %s37
      %p46 = scmp.eq.s32.totalorder %s17, 1
      %p47 = por %p45, %p46
      %p48 = scmp.ne.s32.totalorder %s37, %s38
      %p49 = scmp.eq.s32.totalorder %s17, 0
      %p50 = por %p48, %p49
      %p51 = scmp.ne.s32.totalorder %s37, %s38
      %p52 = scmp.eq.s32.totalorder %s18, 1
      %p53 = por %p51, %p52
      %p55 = scmp.ne.s32.totalorder %s38, %s54
      %p56 = scmp.eq.s32.totalorder %s18, 0
      %p57 = por %p55, %p56
      %s58 = ssub.s32 %s20, %s27
      %p59 = scmp.eq.s32.totalorder %s58, 0
      %s61 = sadd.s32 %s60, 1
      %s62 = scalar_select %p59, %s60, %s61
      %p65 = pneg %p59
      %p66 = scmp.eq.s32.totalorder %s12, 1
      %p67 = por %p65, %p66
      %p68 = scmp.ne.s32.totalorder %s60, %s63
      %p69 = scmp.eq.s32.totalorder %s12, 0
      %p70 = por %p68, %p69
      %p71 = scmp.ne.s32.totalorder %s60, %s63
      %p72 = scmp.eq.s32.totalorder %s17, 1
      %p73 = por %p71, %p72
      %p74 = scmp.ne.s32.totalorder %s63, %s64
      %p75 = scmp.eq.s32.totalorder %s17, 0
      %p76 = por %p74, %p75
      %p77 = scmp.ne.s32.totalorder %s63, %s64
      %p78 = scmp.eq.s32.totalorder %s18, 1
      %p79 = por %p77, %p78
      %p81 = scmp.ne.s32.totalorder %s64, %s80
      %p82 = scmp.eq.s32.totalorder %s18, 0
      %p83 = por %p81, %p82
      %s84 = ssub.s32 %s19, %s31
      %p85 = scmp.eq.s32.totalorder %s84, 0
      %s87 = sadd.s32 %s86, 1
      %s88 = scalar_select %p85, %s86, %s87
      %p91 = pneg %p85
      %p92 = scmp.eq.s32.totalorder %s12, 1
      %p93 = por %p91, %p92
      %p94 = scmp.ne.s32.totalorder %s86, %s89
      %p95 = scmp.eq.s32.totalorder %s12, 0
      %p96 = por %p94, %p95
      %p97 = scmp.ne.s32.totalorder %s86, %s89
      %p98 = scmp.eq.s32.totalorder %s17, 1
      %p99 = por %p97, %p98
      %p100 = scmp.ne.s32.totalorder %s89, %s90
      %p101 = scmp.eq.s32.totalorder %s17, 0
      %p102 = por %p100, %p101
      %p103 = scmp.ne.s32.totalorder %s89, %s90
      %p104 = scmp.eq.s32.totalorder %s18, 1
      %p105 = por %p103, %p104
      %p107 = scmp.ne.s32.totalorder %s90, %s106
      %p108 = scmp.eq.s32.totalorder %s18, 0
      %p109 = por %p107, %p108
      %p110 = scmp.le.s32.totalorder 1, %s12
      %p111 = scmp.lt.s32.totalorder %s12, 3
      %p112 = pnand %p110, %p111
      %p113 = pneg %p112
      // Predicated region
      $region9: #{tpu_custom_call.1} parent=5 // pred_check
        _
      $region10: #{tpu_custom_call.1} parent=5 // pred_check_branch
        %115 = sbr.rel (%p112) target = $region12
      $region11: #{tpu_custom_call.1} parent=5 // pred_region
        %s116 = ssub.s32 %s12, 1
        // Predicated region
        $region13: #{tpu_custom_call.1} parent=11 // pred_check
          %p117 = pneg %p76
        $region14: #{tpu_custom_call.1} parent=11 // pred_check_branch
          %119 = sbr.rel (%p117) target = $region16
        $region15: #{tpu_custom_call.1} parent=11 // pred_region
          %s120 = smul.u32 32, %s22
          %122 = vsyncadd [#allocation4], 0
          %s123 = smul.addr %s120, 8
          %s124 = scalar_lea.hbm %s1, %s123
          %s125 = sshll.u32 %s124, 4
          %s126 = int_to_ptr.hbm [resolvable:$true] %s125
          %s127 = sshll.u32 [#allocation3], 4
          %s128 = int_to_ptr.vmem [resolvable:$true] %s127
          %133 = dma.hbm_to_vmem [thread:$0]  %s126, 4096, %s128, [#allocation4], 128, 128, 8
        $region16: #{tpu_custom_call.1} parent=11 // pred_fallthru
          _
      $region12: #{tpu_custom_call.1} parent=5 // pred_fallthru
        _
      %p134 = scmp.lt.s32.totalorder %s12, 2
      // Predicated region
      $region17: #{tpu_custom_call.1} parent=5 // pred_check
        %p135 = pneg %p134
      $region18: #{tpu_custom_call.1} parent=5 // pred_check_branch
        %137 = sbr.rel (%p135) target = $region20
      $region19: #{tpu_custom_call.1} parent=5 // pred_region
        // Predicated region
        $region21: #{tpu_custom_call.1} parent=19 // pred_check
          %p138 = pneg %p44
        $region22: #{tpu_custom_call.1} parent=19 // pred_check_branch
          %140 = sbr.rel (%p138) target = $region24
        $region23: #{tpu_custom_call.1} parent=19 // pred_region
          %s141 = smul.u32 2, %s19
          %p142 = scmp.lt.s32.totalorder %s141, 3
          %s143 = scalar_select %p142, %s141, 3
          %s144 = smul.addr %s143, 8
          %s145 = scalar_lea.vmem %s0, %s144
          %s146 = smul.u32 2, %s19
        $region24: #{tpu_custom_call.1} parent=19 // pred_fallthru
          _
      $region20: #{tpu_custom_call.1} parent=5 // pred_fallthru
        _
      %p147 = scmp.le.s32.totalorder 1, %s12
      %p148 = scmp.lt.s32.totalorder %s12, 3
      %p149 = pnand %p147, %p148
      %p150 = pneg %p149
      // Predicated region
      $region25: #{tpu_custom_call.1} parent=5 // pred_check
        _
      $region26: #{tpu_custom_call.1} parent=5 // pred_check_branch
        %152 = sbr.rel (%p149) target = $region28
      $region27: #{tpu_custom_call.1} parent=5 // pred_region
        %s153 = ssub.s32 %s12, 1
        // Predicated region
        $region29: #{tpu_custom_call.1} parent=27 // pred_check
          %p154 = pneg %p76
        $region30: #{tpu_custom_call.1} parent=27 // pred_check_branch
          %156 = sbr.rel (%p154) target = $region32
        $region31: #{tpu_custom_call.1} parent=27 // pred_region
          %158 = dma.done [#allocation4], 4096
        $region32: #{tpu_custom_call.1} parent=27 // pred_fallthru
          _
        %s159 = smul.u32 2, %s21
        %p160 = scmp.lt.s32.totalorder %s159, 3
        %s161 = scalar_select %p160, %s159, 3
        %s162 = smul.addr %s161, 8
        %s163 = scalar_lea.vmem %s0, %s162
        %p164 = pneg %p50
        %p165 = pneg %p47
        %p166 = pneg %p76
        %p167 = pneg %p73
        %p168 = pneg %p102
        %p169 = pneg %p99
        %s170 = sand.u32 %s89, 1
        %s171 = scalar_lea.sflag [#allocation5], %s170
        %s172 = sand.u32 %s89, 1
        %s173 = smul.addr %s172, 16
        %s174 = scalar_lea.vmem [#allocation6], %s173
        %s175 = smul.u32 2, %s21
        %p176 = scmp.lt.s32.totalorder %s175, 3
        %s177 = scalar_select %p176, %s175, 3
        %s178 = smul.addr %s177, 8
        %s179 = scalar_lea.vmem %s0, %s178
        %s180 = smul.u32 2, %s21
        %s181 = smul.u32 32, %s22
        %s182 = smul.u32 2, %s21
        %p183 = scmp.eq.s32.totalorder %s22, 0
        // Predicated region
        $region33: #{tpu_custom_call.1} parent=27 // pred_check
          %p184 = pneg %p183
        $region34: #{tpu_custom_call.1} parent=27 // pred_check_branch
          %186 = sbr.rel (%p184) target = $region36
        $region35: #{tpu_custom_call.1} parent=27 // pred_region
          %187 = vst [vmem:[#allocation2] sm:$0xff] 0.0
          %188 = vst [vmem:[#allocation2 + $0x8] sm:$0xff] 0.0
        $region36: #{tpu_custom_call.1} parent=27 // pred_fallthru
          _
        %v189 = vlaneseq
        %v190 = vand.u32 %v189, 127
        %v191 = vadd.s32 %v190, 128
        %s192 = smul.u32 %s22, 256
        %v193 = vstv %s192
        %v194 = vadd.s32 %v190, %v193
        %v195 = vadd.s32 %v191, %v193
        %v196 = vld [vmem:[%s179] sm:$0xff]
        %v197 = vld [vmem:[%s179 + $0x8] sm:$0xff]
        %198 = vset.pattern.permute.xlu0 0
        %199 = vperm.xlu0 %198, %v196
        %v200 = vpop.permute.xlu0 %199
        %201 = vset.pattern.permute.xlu0 0
        %202 = vperm.xlu0 %201, %v197
        %v203 = vpop.permute.xlu0 %202
        %vm204 = vcmp.eq.s32.totalorder %v200, %v194
        %vm205 = vcmp.eq.s32.totalorder %v200, %v195
        %vm206 = vcmp.eq.s32.totalorder %v203, %v194
        %vm207 = vcmp.eq.s32.totalorder %v203, %v195
        %v208 = vsel %vm204, 1, 0
        %v209 = vsel %vm205, 1, 0
        %v210 = vsel %vm206, 1, 0
        %v211 = vsel %vm207, 1, 0
        %v212 = vcvt.s32.f32 %v208
        %v213 = vcvt.s32.f32 %v209
        %v214 = vcvt.s32.f32 %v210
        %v215 = vcvt.s32.f32 %v211
        %v216 = vld [vmem:[#allocation2] sm:$0xff]
        %v217 = vld [vmem:[#allocation2 + $0x8] sm:$0xff]
        %v218 = vld [vmem:[#allocation3] sm:$0xff]
        %v219 = vld [vmem:[#allocation3 + $0x8] sm:$0xff]
        %v220 = vld [vmem:[#allocation3 + $0x10] sm:$0xff]
        %v221 = vld [vmem:[#allocation3 + $0x18] sm:$0xff]
        %v222 = vld [vmem:[#allocation3 + $0x20] sm:$0xff]
        %v223 = vld [vmem:[#allocation3 + $0x28] sm:$0xff]
        %v224 = vld [vmem:[#allocation3 + $0x30] sm:$0xff]
        %v225 = vld [vmem:[#allocation3 + $0x38] sm:$0xff]
        %v226 = vld [vmem:[#allocation3 + $0x40] sm:$0xff]
        %v227 = vld [vmem:[#allocation3 + $0x48] sm:$0xff]
        %v228 = vld [vmem:[#allocation3 + $0x50] sm:$0xff]
        %v229 = vld [vmem:[#allocation3 + $0x58] sm:$0xff]
        %v230 = vld [vmem:[#allocation3 + $0x60] sm:$0xff]
        %v231 = vld [vmem:[#allocation3 + $0x68] sm:$0xff]
        %v232 = vld [vmem:[#allocation3 + $0x70] sm:$0xff]
        %v233 = vld [vmem:[#allocation3 + $0x78] sm:$0xff]
        %v234 = vld [vmem:[#allocation3 + $0x80] sm:$0xff]
        %v235 = vld [vmem:[#allocation3 + $0x88] sm:$0xff]
        %v236 = vld [vmem:[#allocation3 + $0x90] sm:$0xff]
        %v237 = vld [vmem:[#allocation3 + $0x98] sm:$0xff]
        %v238 = vld [vmem:[#allocation3 + $0xa0] sm:$0xff]
        %v239 = vld [vmem:[#allocation3 + $0xa8] sm:$0xff]
        %v240 = vld [vmem:[#allocation3 + $0xb0] sm:$0xff]
        %v241 = vld [vmem:[#allocation3 + $0xb8] sm:$0xff]
        %v242 = vld [vmem:[#allocation3 + $0xc0] sm:$0xff]
        %v243 = vld [vmem:[#allocation3 + $0xc8] sm:$0xff]
        %v244 = vld [vmem:[#allocation3 + $0xd0] sm:$0xff]
        %v245 = vld [vmem:[#allocation3 + $0xd8] sm:$0xff]
        %v246 = vld [vmem:[#allocation3 + $0xe0] sm:$0xff]
        %v247 = vld [vmem:[#allocation3 + $0xe8] sm:$0xff]
        %v248 = vld [vmem:[#allocation3 + $0xf0] sm:$0xff]
        %v249 = vld [vmem:[#allocation3 + $0xf8] sm:$0xff]
        %250 = vmatpush.msra.mxu0 %v233
        %251 = vmatpush.msra.mxu0 %v232
        %252 = vmatpush.msra.mxu0 %v231
        %253 = vmatpush.msra.mxu0 %v230
        %254 = vmatpush.msra.mxu0 %v229
        %255 = vmatpush.msra.mxu0 %v228
        %256 = vmatpush.msra.mxu0 %v227
        %257 = vmatpush.msra.mxu0 %v226
        %258 = vmatpush.msra.mxu0 %v225
        %259 = vmatpush.msra.mxu0 %v224
        %260 = vmatpush.msra.mxu0 %v223
        %261 = vmatpush.msra.mxu0 %v222
        %262 = vmatpush.msra.mxu0 %v221
        %263 = vmatpush.msra.mxu0 %v220
        %264 = vmatpush.msra.mxu0 %v219
        %265 = vmatpush.msra.mxu0 %v218
        %266 = vmatmul.f32.gmra.mxu0 %v212
        %v267 = vpop.f32.mrf.mxu0
        %v268 = vadd.f32 0.0, %v267
        %269 = vmatmul.f32.gmra.mxu0 %v214
        %v270 = vpop.f32.mrf.mxu0
        %v271 = vadd.f32 0.0, %v270
        %272 = vdwg.mxu0
        %273 = vmatpush.msra.mxu0 %v249
        %274 = vmatpush.msra.mxu0 %v248
        %275 = vmatpush.msra.mxu0 %v247
        %276 = vmatpush.msra.mxu0 %v246
        %277 = vmatpush.msra.mxu0 %v245
        %278 = vmatpush.msra.mxu0 %v244
        %279 = vmatpush.msra.mxu0 %v243
        %280 = vmatpush.msra.mxu0 %v242
        %281 = vmatpush.msra.mxu0 %v241
        %282 = vmatpush.msra.mxu0 %v240
        %283 = vmatpush.msra.mxu0 %v239
        %284 = vmatpush.msra.mxu0 %v238
        %285 = vmatpush.msra.mxu0 %v237
        %286 = vmatpush.msra.mxu0 %v236
        %287 = vmatpush.msra.mxu0 %v235
        %288 = vmatpush.msra.mxu0 %v234
        %289 = vmatmul.f32.gmra.mxu0 %v213
        %v290 = vpop.f32.mrf.mxu0
        %v291 = vadd.f32 %v268, %v290
        %292 = vmatmul.f32.gmra.mxu0 %v215
        %v293 = vpop.f32.mrf.mxu0
        %v294 = vadd.f32 %v271, %v293
        %295 = vdwg.mxu0
        %v296 = vadd.f32 %v216, %v291
        %v297 = vadd.f32 %v217, %v294
        %298 = vst [vmem:[#allocation2] sm:$0xff] %v296
        %299 = vst [vmem:[#allocation2 + $0x8] sm:$0xff] %v297
        // Predicated region
        $region37: #{tpu_custom_call.1} parent=27 // pred_check
          %p300 = pneg %p183
        $region38: #{tpu_custom_call.1} parent=27 // pred_check_branch
          %302 = sbr.rel (%p300) target = $region40
        $region39: #{tpu_custom_call.1} parent=27 // pred_region
          %v303 = vld [vmem:[#allocation2] sm:$0xff]
          %v304 = vld [vmem:[#allocation2 + $0x8] sm:$0xff]
          %305 = vst [vmem:[%s174] sm:$0xff] %v303
          %306 = vst [vmem:[%s174 + $0x8] sm:$0xff] %v304
        $region40: #{tpu_custom_call.1} parent=27 // pred_fallthru
          _
        %s307 = sand.u32 %s89, 1
        %s308 = scalar_lea.sflag [#allocation5], %s307
        %s309 = sand.u32 %s89, 1
        %s310 = smul.addr %s309, 16
        %s311 = scalar_lea.vmem [#allocation6], %s310
        // Predicated region
        $region41: #{tpu_custom_call.1} parent=27 // pred_check
          %p312 = pneg %p99
        $region42: #{tpu_custom_call.1} parent=27 // pred_check_branch
          %314 = sbr.rel (%p312) target = $region44
        $region43: #{tpu_custom_call.1} parent=27 // pred_region
          %s315 = smul.u32 2, %s21
          %317 = vsyncadd %s308, 0
          %s318 = smul.addr %s315, 8
          %s319 = scalar_lea.hbm %s2, %s318
          %s320 = sshll.u32 %s311, 4
          %s321 = int_to_ptr.vmem [resolvable:$true] %s320
          %s322 = sshll.u32 %s319, 4
          %s323 = int_to_ptr.hbm [resolvable:$true] %s322
          %328 = dma.vmem_to_hbm [thread:$0]  %s321, 256, %s323, %s308, 128, 128, 8
        $region44: #{tpu_custom_call.1} parent=27 // pred_fallthru
          _
      $region28: #{tpu_custom_call.1} parent=5 // pred_fallthru
        _
      %p329 = scmp.le.s32.totalorder 2, %s12
      // Predicated region
      $region45: #{tpu_custom_call.1} parent=5 // pred_check
        %p330 = pneg %p329
      $region46: #{tpu_custom_call.1} parent=5 // pred_check_branch
        %332 = sbr.rel (%p330) target = $region48
      $region47: #{tpu_custom_call.1} parent=5 // pred_region
        %s333 = ssub.s32 %s12, 2
        // Predicated region
        $region49: #{tpu_custom_call.1} parent=47 // pred_check
          %p334 = pneg %p105
        $region50: #{tpu_custom_call.1} parent=47 // pred_check_branch
          %336 = sbr.rel (%p334) target = $region52
        $region51: #{tpu_custom_call.1} parent=47 // pred_region
          %s337 = sand.u32 %s90, 1
          %s338 = scalar_lea.sflag [#allocation5], %s337
          %s339 = sand.u32 %s90, 1
          %s340 = smul.addr %s339, 16
          %s341 = scalar_lea.vmem [#allocation6], %s340
          %343 = dma.done %s338, 256
        $region52: #{tpu_custom_call.1} parent=47 // pred_fallthru
          _
      $region48: #{tpu_custom_call.1} parent=5 // pred_fallthru
        _
    $region6: #{tpu_custom_call.1} parent=1 // loop_footer
      %s16 = sadd.s32 1, %s12
    $region7: #{tpu_custom_call.1} parent=1 // loop_footer_branch
      %11 = sbr.rel target = $region3
    $region8: #{tpu_custom_call.1} parent=1 // loop_exit
      _
    %344 = vsyncpa [#allocation4], 1
    %s345 = scalar_lea.sflag [#allocation4], 1
    %346 = vsyncpa %s345, 1
    %347 = vsyncpa [#allocation5], 1
    %s348 = scalar_lea.sflag [#allocation5], 1
    %349 = vsyncpa %s348, 1

</llo_original>
